<compile_context>
chip_gen: v5e
topology: v5e:2x2
jax: 0.10.0
libtpu: 0.0.40
codegen_flags: <defaults>
</compile_context>

<pallas_src>
import numpy as np
import jax
import jax.numpy as jnp
from jax.experimental import pallas as pl
from jax.experimental.pallas import tpu as pltpu

EPS = 1e-5  # BatchNorm eps


def _w2aa_kernel(x1_ref, x2_ref, w1_ref, w2_ref, p_ref, out_ref):
    N, Cin = x1_ref.shape
    Cout = w1_ref.shape[1]

    x1 = x1_ref[...]                       # [N, Cin] f32
    x2 = x2_ref[...]                       # [N, Cin] f32
    w1 = w1_ref[...]                       # [Cin, Cout]
    w2 = w2_ref[...]                       # [Cout, Cout]

    # Packed BN params (one DMA): rows = [g1, b1, g2, b2, gy, by, gz, bz].
    g1 = p_ref[0:1, :Cout]
    b1 = p_ref[1:2, :Cout]
    g2 = p_ref[2:3, :Cout]
    b2 = p_ref[3:4, :Cout]
    gy = p_ref[4:5, :Cout]
    by = p_ref[5:6, :Cout]
    gz = p_ref[6:7, :2 * Cin]
    bz = p_ref[7:8, :2 * Cin]

    inv_2n = 1.0 / float(2 * N)
    inv_n = 1.0 / float(N)

    def wbn_relu(h1, h2, g, b):
        # Joint-stream train-mode BN (biased variance), one-pass form.
        s = jnp.sum(h1, axis=0, keepdims=True) + jnp.sum(h2, axis=0, keepdims=True)
        ss = (jnp.sum(h1 * h1, axis=0, keepdims=True)
              + jnp.sum(h2 * h2, axis=0, keepdims=True))
        m = s * inv_2n
        var = ss * inv_2n - m * m
        scale = g * jax.lax.rsqrt(var + EPS)
        shift = b - m * scale
        return (jnp.maximum(h1 * scale + shift, 0.0),
                jnp.maximum(h2 * scale + shift, 0.0))

    def bn(v, g, b):
        # Per-channel train-mode BN (biased variance), one-pass form.
        s = jnp.sum(v, axis=0, keepdims=True)
        ss = jnp.sum(v * v, axis=0, keepdims=True)
        m = s * inv_n
        var = ss * inv_n - m * m
        scale = g * jax.lax.rsqrt(var + EPS)
        return v * scale + (b - m * scale)

    # --- wblocks stage 1: MinLinear -> WBatchNorm1d -> ReLU ---
    h1 = jnp.dot(x1, w1, preferred_element_type=jnp.float32)   # MXU, f32 acc
    h2 = jnp.dot(x2, w1, preferred_element_type=jnp.float32)
    h1, h2 = wbn_relu(h1, h2, g1, b1)

    # --- wblocks stage 2 ---
    h1 = jnp.dot(h1, w2, preferred_element_type=jnp.float32)
    h2 = jnp.dot(h2, w2, preferred_element_type=jnp.float32)
    h1, h2 = wbn_relu(h1, h2, g2, b2)

    # --- MaxY: elementwise max over the pair, then BatchNorm1d ---
    y = bn(jnp.maximum(h1, h2), gy, by)                         # [N, Cout]

    # --- MinMaxY on the raw input pair: cat(min, max) on channels, then BatchNorm1d ---
    z = jnp.concatenate([jnp.minimum(x1, x2), jnp.maximum(x1, x2)], axis=1)  # [N, 2*Cin]
    z = bn(z, gz, bz)

    # --- cat((y, z), dim=1): single lane-dense store ---
    out_ref[...] = jnp.concatenate([y, z], axis=1)              # [N, Cout + 2*Cin]


def pack_bn_params(Cin, Cout, g1, b1, g2, b2, gy, by, gz, bz):
    """Pack the eight BN parameter vectors into one [8, max(Cout, 2*Cin)] f32 array."""
    P = max(Cout, 2 * Cin)

    def row(v):
        v = jnp.asarray(v, jnp.float32).reshape(1, -1)
        return jnp.pad(v, ((0, 0), (0, P - v.shape[1])))

    return jnp.concatenate(
        [row(g1), row(b1), row(g2), row(b2), row(gy), row(by), row(gz), row(bz)],
        axis=0)                                                 # [8, P]


def w2aa_forward(x1, x2, w1, w2, bn_params):
    """W2AABlock forward.  x1, x2: [N, Cin] (the braid pair).  Returns [N, Cout + 2*Cin]."""
    N, Cin = x1.shape
    Cout = w1.shape[1]
    Dout = Cout + 2 * Cin

    vspec = pl.BlockSpec(memory_space=pltpu.MemorySpace.VMEM)   # whole array in VMEM, gridless
    return pl.pallas_call(
        _w2aa_kernel,
        out_shape=jax.ShapeDtypeStruct((N, Dout), jnp.float32),
        in_specs=[vspec, vspec, vspec, vspec, vspec],
        out_specs=vspec,
    )(x1, x2, w1, w2, bn_params)


def w2aa_reference(x1, x2, w1, g1, b1, w2, g2, b2, gy, by, gz, bz):
    """Pure-JAX reference mirroring the (assumed) PyTorch W2AABlock train-mode forward."""
    N = x1.shape[0]

    def bn(v, g, b):
        m = jnp.mean(v, axis=0, keepdims=True)
        var = jnp.mean((v - m) ** 2, axis=0, keepdims=True)     # two-pass / centered form
        return (v - m) * g * jax.lax.rsqrt(var + EPS) + b

    X = jnp.concatenate([x1, x2], axis=0)
    h = jnp.maximum(bn(jnp.dot(X, w1, preferred_element_type=jnp.float32), g1, b1), 0.0)
    h = jnp.maximum(bn(jnp.dot(h, w2, preferred_element_type=jnp.float32), g2, b2), 0.0)
    y = bn(jnp.maximum(h[:N], h[N:]), gy, by)
    z = bn(jnp.concatenate([jnp.minimum(x1, x2), jnp.maximum(x1, x2)], axis=1), gz, bz)
    return jnp.concatenate([y, z], axis=1)


if __name__ == "__main__":
    key = jax.random.PRNGKey(0)
    ks = jax.random.split(key, 12)

    # Small shapes consistent with the module: W2AABlock(channel_in=32, channel_out=64), batch=8.
    N, Cin, Cout = 8, 32, 64

    x1 = jax.random.normal(ks[0], (N, Cin), jnp.float32)
    x2 = jax.random.normal(ks[1], (N, Cin), jnp.float32)
    # Linear weights stored as [in, out] (transposed vs. PyTorch's [out, in]).
    w1 = 0.1 * jax.random.normal(ks[2], (Cin, Cout), jnp.float32)
    w2 = 0.1 * jax.random.normal(ks[3], (Cout, Cout), jnp.float32)
    g1 = 1.0 + 0.1 * jax.random.normal(ks[4], (1, Cout), jnp.float32)
    b1 = 0.1 * jax.random.normal(ks[5], (1, Cout), jnp.float32)
    g2 = 1.0 + 0.1 * jax.random.normal(ks[6], (1, Cout), jnp.float32)
    b2 = 0.1 * jax.random.normal(ks[7], (1, Cout), jnp.float32)
    gy = 1.0 + 0.1 * jax.random.normal(ks[8], (1, Cout), jnp.float32)
    by = 0.1 * jax.random.normal(ks[9], (1, Cout), jnp.float32)
    gz = 1.0 + 0.1 * jax.random.normal(ks[10], (1, 2 * Cin), jnp.float32)
    bz = 0.1 * jax.random.normal(ks[11], (1, 2 * Cin), jnp.float32)

    # Parameter packing is a one-time, init-time operation (not per-step work).
    bn_params = pack_bn_params(Cin, Cout, g1, b1, g2, b2, gy, by, gz, bz)

    out = jax.block_until_ready(w2aa_forward(x1, x2, w1, w2, bn_params))
    ref = w2aa_reference(x1, x2, w1, g1, b1, w2, g2, b2, gy, by, gz, bz)

    assert out.shape == ref.shape == (N, Cout + 2 * Cin), (out.shape, ref.shape)
    np.testing.assert_allclose(np.asarray(out), np.asarray(ref), rtol=5e-3, atol=5e-3)

    print("KERNEL_OK")
</pallas_src>

<mosaic_0001>
module attributes {stable_mosaic.version = 11 : i64} {
  func.func @_w2aa_kernel(%arg0: memref<8x32xf32, #tpu.memory_space<vmem>>, %arg1: memref<8x32xf32, #tpu.memory_space<vmem>>, %arg2: memref<32x64xf32, #tpu.memory_space<vmem>>, %arg3: memref<64x64xf32, #tpu.memory_space<vmem>>, %arg4: memref<8x64xf32, #tpu.memory_space<vmem>>, %arg5: memref<8x128xf32, #tpu.memory_space<vmem>>) attributes {dimension_semantics = [], scalar_prefetch = 0 : i64, scratch_operands = 0 : i64, tpu.core_type = #tpu.core_type<tc>} {
    %c0 = arith.constant 0 : index
    %c0_0 = arith.constant 0 : index
    %0 = vector.load %arg0[%c0, %c0_0] : memref<8x32xf32, #tpu.memory_space<vmem>>, vector<8x32xf32>
    %c0_1 = arith.constant 0 : index
    %c0_2 = arith.constant 0 : index
    %1 = vector.load %arg1[%c0_1, %c0_2] : memref<8x32xf32, #tpu.memory_space<vmem>>, vector<8x32xf32>
    %c0_3 = arith.constant 0 : index
    %c0_4 = arith.constant 0 : index
    %2 = vector.load %arg2[%c0_3, %c0_4] : memref<32x64xf32, #tpu.memory_space<vmem>>, vector<32x64xf32>
    %c0_5 = arith.constant 0 : index
    %c0_6 = arith.constant 0 : index
    %3 = vector.load %arg3[%c0_5, %c0_6] : memref<64x64xf32, #tpu.memory_space<vmem>>, vector<64x64xf32>
    %c0_7 = arith.constant 0 : index
    %c0_8 = arith.constant 0 : index
    %4 = vector.load %arg4[%c0_7, %c0_8] : memref<8x64xf32, #tpu.memory_space<vmem>>, vector<1x64xf32>
    %c1 = arith.constant 1 : index
    %c0_9 = arith.constant 0 : index
    %5 = vector.load %arg4[%c1, %c0_9] : memref<8x64xf32, #tpu.memory_space<vmem>>, vector<1x64xf32>
    %c2 = arith.constant 2 : index
    %c0_10 = arith.constant 0 : index
    %6 = vector.load %arg4[%c2, %c0_10] : memref<8x64xf32, #tpu.memory_space<vmem>>, vector<1x64xf32>
    %c3 = arith.constant 3 : index
    %c0_11 = arith.constant 0 : index
    %7 = vector.load %arg4[%c3, %c0_11] : memref<8x64xf32, #tpu.memory_space<vmem>>, vector<1x64xf32>
    %c4 = arith.constant 4 : index
    %c0_12 = arith.constant 0 : index
    %8 = vector.load %arg4[%c4, %c0_12] : memref<8x64xf32, #tpu.memory_space<vmem>>, vector<1x64xf32>
    %c5 = arith.constant 5 : index
    %c0_13 = arith.constant 0 : index
    %9 = vector.load %arg4[%c5, %c0_13] : memref<8x64xf32, #tpu.memory_space<vmem>>, vector<1x64xf32>
    %c6 = arith.constant 6 : index
    %c0_14 = arith.constant 0 : index
    %10 = vector.load %arg4[%c6, %c0_14] : memref<8x64xf32, #tpu.memory_space<vmem>>, vector<1x64xf32>
    %c7 = arith.constant 7 : index
    %c0_15 = arith.constant 0 : index
    %11 = vector.load %arg4[%c7, %c0_15] : memref<8x64xf32, #tpu.memory_space<vmem>>, vector<1x64xf32>
    %cst = arith.constant dense<0.000000e+00> : vector<8x64xf32>
    %12 = tpu.matmul %0, %2, %cst {dimension_numbers = #tpu.dot_dimension_numbers<[1], [0], [0], [1], [0, 0, 1, 1], [], []>} : vector<8x32xf32>, vector<32x64xf32>, vector<8x64xf32> -> vector<8x64xf32>
    %cst_16 = arith.constant dense<0.000000e+00> : vector<8x64xf32>
    %13 = tpu.matmul %1, %2, %cst_16 {dimension_numbers = #tpu.dot_dimension_numbers<[1], [0], [0], [1], [0, 0, 1, 1], [], []>} : vector<8x32xf32>, vector<32x64xf32>, vector<8x64xf32> -> vector<8x64xf32>
    %cst_17 = arith.constant dense<0.000000e+00> : vector<64xf32>
    %14 = vector.multi_reduction <add>, %12, %cst_17 [0] : vector<8x64xf32> to vector<64xf32>
    %15 = vector.shape_cast %14 : vector<64xf32> to vector<1x64xf32>
    %cst_18 = arith.constant dense<0.000000e+00> : vector<64xf32>
    %16 = vector.multi_reduction <add>, %13, %cst_18 [0] : vector<8x64xf32> to vector<64xf32>
    %17 = vector.shape_cast %16 : vector<64xf32> to vector<1x64xf32>
    %18 = arith.addf %15, %17 : vector<1x64xf32>
    %19 = arith.mulf %12, %12 : vector<8x64xf32>
    %cst_19 = arith.constant dense<0.000000e+00> : vector<64xf32>
    %20 = vector.multi_reduction <add>, %19, %cst_19 [0] : vector<8x64xf32> to vector<64xf32>
    %21 = vector.shape_cast %20 : vector<64xf32> to vector<1x64xf32>
    %22 = arith.mulf %13, %13 : vector<8x64xf32>
    %cst_20 = arith.constant dense<0.000000e+00> : vector<64xf32>
    %23 = vector.multi_reduction <add>, %22, %cst_20 [0] : vector<8x64xf32> to vector<64xf32>
    %24 = vector.shape_cast %23 : vector<64xf32> to vector<1x64xf32>
    %25 = arith.addf %21, %24 : vector<1x64xf32>
    %cst_21 = arith.constant 6.250000e-02 : f32
    %26 = vector.broadcast %cst_21 : f32 to vector<1x64xf32>
    %27 = arith.mulf %18, %26 : vector<1x64xf32>
    %cst_22 = arith.constant 6.250000e-02 : f32
    %28 = vector.broadcast %cst_22 : f32 to vector<1x64xf32>
    %29 = arith.mulf %25, %28 : vector<1x64xf32>
    %30 = arith.mulf %27, %27 : vector<1x64xf32>
    %31 = arith.subf %29, %30 : vector<1x64xf32>
    %cst_23 = arith.constant 9.99999974E-6 : f32
    %32 = vector.broadcast %cst_23 : f32 to vector<1x64xf32>
    %33 = arith.addf %31, %32 : vector<1x64xf32>
    %34 = math.rsqrt %33 : vector<1x64xf32>
    %35 = arith.mulf %4, %34 : vector<1x64xf32>
    %36 = arith.mulf %27, %35 : vector<1x64xf32>
    %37 = arith.subf %5, %36 : vector<1x64xf32>
    %38 = vector.broadcast %35 : vector<1x64xf32> to vector<8x64xf32>
    %39 = arith.mulf %12, %38 : vector<8x64xf32>
    %40 = vector.broadcast %37 : vector<1x64xf32> to vector<8x64xf32>
    %41 = arith.addf %39, %40 : vector<8x64xf32>
    %cst_24 = arith.constant 0.000000e+00 : f32
    %42 = vector.broadcast %cst_24 : f32 to vector<8x64xf32>
    %43 = arith.maximumf %41, %42 : vector<8x64xf32>
    %44 = vector.broadcast %35 : vector<1x64xf32> to vector<8x64xf32>
    %45 = arith.mulf %13, %44 : vector<8x64xf32>
    %46 = vector.broadcast %37 : vector<1x64xf32> to vector<8x64xf32>
    %47 = arith.addf %45, %46 : vector<8x64xf32>
    %cst_25 = arith.constant 0.000000e+00 : f32
    %48 = vector.broadcast %cst_25 : f32 to vector<8x64xf32>
    %49 = arith.maximumf %47, %48 : vector<8x64xf32>
    %cst_26 = arith.constant dense<0.000000e+00> : vector<8x64xf32>
    %50 = tpu.matmul %43, %3, %cst_26 {dimension_numbers = #tpu.dot_dimension_numbers<[1], [0], [0], [1], [0, 0, 1, 1], [], []>} : vector<8x64xf32>, vector<64x64xf32>, vector<8x64xf32> -> vector<8x64xf32>
    %cst_27 = arith.constant dense<0.000000e+00> : vector<8x64xf32>
    %51 = tpu.matmul %49, %3, %cst_27 {dimension_numbers = #tpu.dot_dimension_numbers<[1], [0], [0], [1], [0, 0, 1, 1], [], []>} : vector<8x64xf32>, vector<64x64xf32>, vector<8x64xf32> -> vector<8x64xf32>
    %cst_28 = arith.constant dense<0.000000e+00> : vector<64xf32>
    %52 = vector.multi_reduction <add>, %50, %cst_28 [0] : vector<8x64xf32> to vector<64xf32>
    %53 = vector.shape_cast %52 : vector<64xf32> to vector<1x64xf32>
    %cst_29 = arith.constant dense<0.000000e+00> : vector<64xf32>
    %54 = vector.multi_reduction <add>, %51, %cst_29 [0] : vector<8x64xf32> to vector<64xf32>
    %55 = vector.shape_cast %54 : vector<64xf32> to vector<1x64xf32>
    %56 = arith.addf %53, %55 : vector<1x64xf32>
    %57 = arith.mulf %50, %50 : vector<8x64xf32>
    %cst_30 = arith.constant dense<0.000000e+00> : vector<64xf32>
    %58 = vector.multi_reduction <add>, %57, %cst_30 [0] : vector<8x64xf32> to vector<64xf32>
    %59 = vector.shape_cast %58 : vector<64xf32> to vector<1x64xf32>
    %60 = arith.mulf %51, %51 : vector<8x64xf32>
    %cst_31 = arith.constant dense<0.000000e+00> : vector<64xf32>
    %61 = vector.multi_reduction <add>, %60, %cst_31 [0] : vector<8x64xf32> to vector<64xf32>
    %62 = vector.shape_cast %61 : vector<64xf32> to vector<1x64xf32>
    %63 = arith.addf %59, %62 : vector<1x64xf32>
    %cst_32 = arith.constant 6.250000e-02 : f32
    %64 = vector.broadcast %cst_32 : f32 to vector<1x64xf32>
    %65 = arith.mulf %56, %64 : vector<1x64xf32>
    %cst_33 = arith.constant 6.250000e-02 : f32
    %66 = vector.broadcast %cst_33 : f32 to vector<1x64xf32>
    %67 = arith.mulf %63, %66 : vector<1x64xf32>
    %68 = arith.mulf %65, %65 : vector<1x64xf32>
    %69 = arith.subf %67, %68 : vector<1x64xf32>
    %cst_34 = arith.constant 9.99999974E-6 : f32
    %70 = vector.broadcast %cst_34 : f32 to vector<1x64xf32>
    %71 = arith.addf %69, %70 : vector<1x64xf32>
    %72 = math.rsqrt %71 : vector<1x64xf32>
    %73 = arith.mulf %6, %72 : vector<1x64xf32>
    %74 = arith.mulf %65, %73 : vector<1x64xf32>
    %75 = arith.subf %7, %74 : vector<1x64xf32>
    %76 = vector.broadcast %73 : vector<1x64xf32> to vector<8x64xf32>
    %77 = arith.mulf %50, %76 : vector<8x64xf32>
    %78 = vector.broadcast %75 : vector<1x64xf32> to vector<8x64xf32>
    %79 = arith.addf %77, %78 : vector<8x64xf32>
    %cst_35 = arith.constant 0.000000e+00 : f32
    %80 = vector.broadcast %cst_35 : f32 to vector<8x64xf32>
    %81 = arith.maximumf %79, %80 : vector<8x64xf32>
    %82 = vector.broadcast %73 : vector<1x64xf32> to vector<8x64xf32>
    %83 = arith.mulf %51, %82 : vector<8x64xf32>
    %84 = vector.broadcast %75 : vector<1x64xf32> to vector<8x64xf32>
    %85 = arith.addf %83, %84 : vector<8x64xf32>
    %cst_36 = arith.constant 0.000000e+00 : f32
    %86 = vector.broadcast %cst_36 : f32 to vector<8x64xf32>
    %87 = arith.maximumf %85, %86 : vector<8x64xf32>
    %88 = arith.maximumf %81, %87 : vector<8x64xf32>
    %cst_37 = arith.constant dense<0.000000e+00> : vector<64xf32>
    %89 = vector.multi_reduction <add>, %88, %cst_37 [0] : vector<8x64xf32> to vector<64xf32>
    %90 = vector.shape_cast %89 : vector<64xf32> to vector<1x64xf32>
    %91 = arith.mulf %88, %88 : vector<8x64xf32>
    %cst_38 = arith.constant dense<0.000000e+00> : vector<64xf32>
    %92 = vector.multi_reduction <add>, %91, %cst_38 [0] : vector<8x64xf32> to vector<64xf32>
    %93 = vector.shape_cast %92 : vector<64xf32> to vector<1x64xf32>
    %cst_39 = arith.constant 1.250000e-01 : f32
    %94 = vector.broadcast %cst_39 : f32 to vector<1x64xf32>
    %95 = arith.mulf %90, %94 : vector<1x64xf32>
    %cst_40 = arith.constant 1.250000e-01 : f32
    %96 = vector.broadcast %cst_40 : f32 to vector<1x64xf32>
    %97 = arith.mulf %93, %96 : vector<1x64xf32>
    %98 = arith.mulf %95, %95 : vector<1x64xf32>
    %99 = arith.subf %97, %98 : vector<1x64xf32>
    %cst_41 = arith.constant 9.99999974E-6 : f32
    %100 = vector.broadcast %cst_41 : f32 to vector<1x64xf32>
    %101 = arith.addf %99, %100 : vector<1x64xf32>
    %102 = math.rsqrt %101 : vector<1x64xf32>
    %103 = arith.mulf %8, %102 : vector<1x64xf32>
    %104 = vector.broadcast %103 : vector<1x64xf32> to vector<8x64xf32>
    %105 = arith.mulf %88, %104 : vector<8x64xf32>
    %106 = arith.mulf %95, %103 : vector<1x64xf32>
    %107 = arith.subf %9, %106 : vector<1x64xf32>
    %108 = vector.broadcast %107 : vector<1x64xf32> to vector<8x64xf32>
    %109 = arith.addf %105, %108 : vector<8x64xf32>
    %110 = arith.minimumf %0, %1 : vector<8x32xf32>
    %111 = arith.maximumf %0, %1 : vector<8x32xf32>
    %112 = tpu.concatenate %110, %111 in 1 : vector<8x32xf32>, vector<8x32xf32> -> vector<8x64xf32>
    %cst_42 = arith.constant dense<0.000000e+00> : vector<64xf32>
    %113 = vector.multi_reduction <add>, %112, %cst_42 [0] : vector<8x64xf32> to vector<64xf32>
    %114 = vector.shape_cast %113 : vector<64xf32> to vector<1x64xf32>
    %115 = arith.mulf %112, %112 : vector<8x64xf32>
    %cst_43 = arith.constant dense<0.000000e+00> : vector<64xf32>
    %116 = vector.multi_reduction <add>, %115, %cst_43 [0] : vector<8x64xf32> to vector<64xf32>
    %117 = vector.shape_cast %116 : vector<64xf32> to vector<1x64xf32>
    %cst_44 = arith.constant 1.250000e-01 : f32
    %118 = vector.broadcast %cst_44 : f32 to vector<1x64xf32>
    %119 = arith.mulf %114, %118 : vector<1x64xf32>
    %cst_45 = arith.constant 1.250000e-01 : f32
    %120 = vector.broadcast %cst_45 : f32 to vector<1x64xf32>
    %121 = arith.mulf %117, %120 : vector<1x64xf32>
    %122 = arith.mulf %119, %119 : vector<1x64xf32>
    %123 = arith.subf %121, %122 : vector<1x64xf32>
    %cst_46 = arith.constant 9.99999974E-6 : f32
    %124 = vector.broadcast %cst_46 : f32 to vector<1x64xf32>
    %125 = arith.addf %123, %124 : vector<1x64xf32>
    %126 = math.rsqrt %125 : vector<1x64xf32>
    %127 = arith.mulf %10, %126 : vector<1x64xf32>
    %128 = vector.broadcast %127 : vector<1x64xf32> to vector<8x64xf32>
    %129 = arith.mulf %112, %128 : vector<8x64xf32>
    %130 = arith.mulf %119, %127 : vector<1x64xf32>
    %131 = arith.subf %11, %130 : vector<1x64xf32>
    %132 = vector.broadcast %131 : vector<1x64xf32> to vector<8x64xf32>
    %133 = arith.addf %129, %132 : vector<8x64xf32>
    %134 = tpu.concatenate %109, %133 in 1 : vector<8x64xf32>, vector<8x64xf32> -> vector<8x128xf32>
    %c0_47 = arith.constant 0 : index
    %c0_48 = arith.constant 0 : index
    %135 = vector.load %arg5[%c0_47, %c0_48] : memref<8x128xf32, #tpu.memory_space<vmem>>, vector<8x128xf32>
    tpu.vector_store %arg5[%c0_47, %c0_48], %134 {strides = array<i32>} : memref<8x128xf32, #tpu.memory_space<vmem>>, vector<8x128xf32>,
    return
  }
}

</mosaic_0001>

<llo_original>
// kernel: tpu_custom_call.1
$region0: #{tpu_custom_call.1}
  #allocation0 [shape = 'u32[]', space=smem, size = 0x4, offset = 0x4, fixed_abs, tag = 'smem constant byte address 0x4 - core index']
  #allocation1 [shape = 'u32[72,128]{1,0:T(1,128)}', space=vmem, size = 0x9000, scoped, tag = 'internal scratch']
  %s0 = inlined_call_operand.hbm [shape: f32[8,32], index: 0, kind: input, shape index: {}]
  %s1 = inlined_call_operand.hbm [shape: f32[8,32], index: 1, kind: input, shape index: {}]
  %s2 = inlined_call_operand.hbm [shape: f32[32,64], index: 2, kind: input, shape index: {}]
  %s3 = inlined_call_operand.hbm [shape: f32[64,64], index: 3, kind: input, shape index: {}]
  %s4 = inlined_call_operand.hbm [shape: f32[8,64], index: 4, kind: input, shape index: {}]
  %s5 = inlined_call_operand.hbm [shape: f32[8,128], index: 5, kind: output, shape index: {}]
  %s6 = sld [smem:[#allocation0]]
  $region50: #{tpu_custom_call.1} parent=0
    _
  %s8 = ssub.s32 1, %s6
  %s9 = scalar_select 0, %s8, %s6
  $region1: #{tpu_custom_call.1} parent=0
    #allocation2 [shape = 'u8[4096]{0}', space=vmem, size = 0x1000, scoped, tag = 'input window, operand 0, single buffered']
    #allocation3 [shape = 's32[1]{0}', space=sflag, size = 0x4, scoped, tag = 'scoped memory for tpu_custom_call.1']
    #allocation4 [shape = 's32[1]{0}', space=sflag, size = 0x4, scoped, tag = 'scoped memory for tpu_custom_call.1']
    #allocation5 [shape = 'u8[4096]{0}', space=vmem, size = 0x1000, scoped, tag = 'input window, operand 1, single buffered']
    #allocation6 [shape = 's32[1]{0}', space=sflag, size = 0x4, scoped, tag = 'scoped memory for tpu_custom_call.1']
    #allocation7 [shape = 'u8[16384]{0}', space=vmem, size = 0x4000, scoped, tag = 'input window, operand 2, single buffered']
    #allocation8 [shape = 'u8[32768]{0}', space=vmem, size = 0x8000, scoped, tag = 'input window, operand 3, single buffered']
    #allocation9 [shape = 's32[1]{0}', space=sflag, size = 0x4, scoped, tag = 'scoped memory for tpu_custom_call.1']
    #allocation10 [shape = 'u8[4096]{0}', space=vmem, size = 0x1000, scoped, tag = 'input window, operand 4, single buffered']
    #allocation11 [shape = 'u8[4096]{0}', space=vmem, size = 0x1000, scoped, tag = 'output window, operand 0, single buffered']
    %10 = vsyncpa [#allocation3], 0
    %11 = vsyncpa [#allocation6], 0
    %12 = vsyncpa [#allocation9], 0
    %13 = vsyncpa [#allocation4], 0
    // Predicated region
    $region2: #{tpu_custom_call.1} parent=1 // pred_check
      _
    $region3: #{tpu_custom_call.1} parent=1 // pred_check_branch
      %15 = sbr.rel (0) target = $region5
    $region4: #{tpu_custom_call.1} parent=1 // pred_region
      %17 = vsyncadd [#allocation3], 0
      %s19 = sshll.u32 %s0, 4
      %s20 = int_to_ptr.hbm [resolvable:$true] %s19
      %s21 = sshll.u32 [#allocation2], 4
      %s22 = int_to_ptr.vmem [resolvable:$true] %s21
      %24 = dma.hbm_to_vmem [thread:$0]  %s20, 128, %s22, [#allocation3]
    $region5: #{tpu_custom_call.1} parent=1 // pred_fallthru
      _
    // Predicated region
    $region6: #{tpu_custom_call.1} parent=1 // pred_check
      _
    $region7: #{tpu_custom_call.1} parent=1 // pred_check_branch
      %26 = sbr.rel (0) target = $region9
    $region8: #{tpu_custom_call.1} parent=1 // pred_region
      %28 = vsyncadd [#allocation6], 0
      %s30 = sshll.u32 %s1, 4
      %s31 = int_to_ptr.hbm [resolvable:$true] %s30
      %s32 = sshll.u32 [#allocation5], 4
      %s33 = int_to_ptr.vmem [resolvable:$true] %s32
      %35 = dma.hbm_to_vmem [thread:$0]  %s31, 128, %s33, [#allocation6]
    $region9: #{tpu_custom_call.1} parent=1 // pred_fallthru
      _
    // Predicated region
    $region10: #{tpu_custom_call.1} parent=1 // pred_check
      _
    $region11: #{tpu_custom_call.1} parent=1 // pred_check_branch
      %37 = sbr.rel (0) target = $region13
    $region12: #{tpu_custom_call.1} parent=1 // pred_region
      %39 = vsyncadd [#allocation6], 0
      %s40 = sshll.u32 %s2, 4
      %s41 = int_to_ptr.hbm [resolvable:$true] %s40
      %s42 = sshll.u32 [#allocation7], 4
      %s43 = int_to_ptr.vmem [resolvable:$true] %s42
      %48 = dma.hbm_to_vmem [thread:$0]  %s41, 512, %s43, [#allocation6], 128, 128, 8
    $region13: #{tpu_custom_call.1} parent=1 // pred_fallthru
      _
    // Predicated region
    $region14: #{tpu_custom_call.1} parent=1 // pred_check
      _
    $region15: #{tpu_custom_call.1} parent=1 // pred_check_branch
      %50 = sbr.rel (0) target = $region17
    $region16: #{tpu_custom_call.1} parent=1 // pred_region
      %52 = vsyncadd [#allocation9], 0
      %s53 = sshll.u32 %s3, 4
      %s54 = int_to_ptr.hbm [resolvable:$true] %s53
      %s55 = sshll.u32 [#allocation8], 4
      %s56 = int_to_ptr.vmem [resolvable:$true] %s55
      %61 = dma.hbm_to_vmem [thread:$0]  %s54, 1024, %s56, [#allocation9], 128, 128, 8
    $region17: #{tpu_custom_call.1} parent=1 // pred_fallthru
      _
    // Predicated region
    $region18: #{tpu_custom_call.1} parent=1 // pred_check
      _
    $region19: #{tpu_custom_call.1} parent=1 // pred_check_branch
      %63 = sbr.rel (0) target = $region21
    $region20: #{tpu_custom_call.1} parent=1 // pred_region
      %65 = vsyncadd [#allocation9], 0
      %s67 = sshll.u32 %s4, 4
      %s68 = int_to_ptr.hbm [resolvable:$true] %s67
      %s69 = sshll.u32 [#allocation10], 4
      %s70 = int_to_ptr.vmem [resolvable:$true] %s69
      %72 = dma.hbm_to_vmem [thread:$0]  %s68, 128, %s70, [#allocation9]
    $region21: #{tpu_custom_call.1} parent=1 // pred_fallthru
      _
    // Predicated region
    $region22: #{tpu_custom_call.1} parent=1 // pred_check
      _
    $region23: #{tpu_custom_call.1} parent=1 // pred_check_branch
      %74 = sbr.rel (0) target = $region25
    $region24: #{tpu_custom_call.1} parent=1 // pred_region
      %76 = dma.done [#allocation3], 128
    $region25: #{tpu_custom_call.1} parent=1 // pred_fallthru
      _
    // Predicated region
    $region26: #{tpu_custom_call.1} parent=1 // pred_check
      _
    $region27: #{tpu_custom_call.1} parent=1 // pred_check_branch
      %78 = sbr.rel (0) target = $region29
    $region28: #{tpu_custom_call.1} parent=1 // pred_region
      %80 = dma.done [#allocation6], 128
    $region29: #{tpu_custom_call.1} parent=1 // pred_fallthru
      _
    // Predicated region
    $region30: #{tpu_custom_call.1} parent=1 // pred_check
      _
    $region31: #{tpu_custom_call.1} parent=1 // pred_check_branch
      %82 = sbr.rel (0) target = $region33
    $region32: #{tpu_custom_call.1} parent=1 // pred_region
      %84 = dma.done [#allocation6], 512
    $region33: #{tpu_custom_call.1} parent=1 // pred_fallthru
      _
    // Predicated region
    $region34: #{tpu_custom_call.1} parent=1 // pred_check
      _
    $region35: #{tpu_custom_call.1} parent=1 // pred_check_branch
      %86 = sbr.rel (0) target = $region37
    $region36: #{tpu_custom_call.1} parent=1 // pred_region
      %88 = dma.done [#allocation9], 1024
    $region37: #{tpu_custom_call.1} parent=1 // pred_fallthru
      _
    // Predicated region
    $region38: #{tpu_custom_call.1} parent=1 // pred_check
      _
    $region39: #{tpu_custom_call.1} parent=1 // pred_check_branch
      %90 = sbr.rel (0) target = $region41
    $region40: #{tpu_custom_call.1} parent=1 // pred_region
      %92 = dma.done [#allocation9], 128
    $region41: #{tpu_custom_call.1} parent=1 // pred_fallthru
      _
    %v93 = vld [vmem:[#allocation2] sm:$0xff]
    %v94 = vld [vmem:[#allocation5] sm:$0xff]
    %v95 = vld [vmem:[#allocation7] sm:$0xff]
    %v96 = vld [vmem:[#allocation7 + $0x8] sm:$0xff]
    %v97 = vld [vmem:[#allocation7 + $0x10] sm:$0xff]
    %v98 = vld [vmem:[#allocation7 + $0x18] sm:$0xff]
    %v99 = vld [vmem:[#allocation8] sm:$0xff]
    %v100 = vld [vmem:[#allocation8 + $0x8] sm:$0xff]
    %v101 = vld [vmem:[#allocation8 + $0x10] sm:$0xff]
    %v102 = vld [vmem:[#allocation8 + $0x18] sm:$0xff]
    %v103 = vld [vmem:[#allocation8 + $0x20] sm:$0xff]
    %v104 = vld [vmem:[#allocation8 + $0x28] sm:$0xff]
    %v105 = vld [vmem:[#allocation8 + $0x30] sm:$0xff]
    %v106 = vld [vmem:[#allocation8 + $0x38] sm:$0xff]
    %v107 = vld [vmem:[#allocation10] sm:$0x1]
    %v108 = vld [vmem:[#allocation10 + $0x1] sm:$0x1]
    %v109 = vld [vmem:[#allocation10 + $0x2] sm:$0x1]
    %v110 = vld [vmem:[#allocation10 + $0x3] sm:$0x1]
    %v111 = vld [vmem:[#allocation10 + $0x4] sm:$0x1]
    %v112 = vld [vmem:[#allocation10 + $0x5] sm:$0x1]
    %v113 = vld [vmem:[#allocation10 + $0x6] sm:$0x1]
    %v114 = vld [vmem:[#allocation10 + $0x7] sm:$0x1]
    %vm115 = vcmask 261120
    %v117 = vsel %vm115, %v93, 0
    %119 = vmatpush.msra.mxu0 0.0
    %120 = vmatpush.msra.mxu0 0.0
    %121 = vmatpush.msra.mxu0 0.0
    %122 = vmatpush.msra.mxu0 0.0
    %123 = vmatpush.msra.mxu0 0.0
    %124 = vmatpush.msra.mxu0 0.0
    %125 = vmatpush.msra.mxu0 0.0
    %126 = vmatpush.msra.mxu0 0.0
    %127 = vmatpush.msra.mxu0 0.0
    %128 = vmatpush.msra.mxu0 0.0
    %129 = vmatpush.msra.mxu0 0.0
    %130 = vmatpush.msra.mxu0 0.0
    %131 = vmatpush.msra.mxu0 %v98
    %132 = vmatpush.msra.mxu0 %v97
    %133 = vmatpush.msra.mxu0 %v96
    %134 = vmatpush.msra.mxu0 %v95
    %135 = vmatmul.f32.gmra.mxu0 %v117
    %v136 = vpop.f32.mrf.mxu0
    %v137 = vadd.f32 0.0, %v136
    %138 = vdwg.mxu0
    %v140 = vsel %vm115, %v94, 0
    %142 = vmatpush.msra.mxu0 0.0
    %143 = vmatpush.msra.mxu0 0.0
    %144 = vmatpush.msra.mxu0 0.0
    %145 = vmatpush.msra.mxu0 0.0
    %146 = vmatpush.msra.mxu0 0.0
    %147 = vmatpush.msra.mxu0 0.0
    %148 = vmatpush.msra.mxu0 0.0
    %149 = vmatpush.msra.mxu0 0.0
    %150 = vmatpush.msra.mxu0 0.0
    %151 = vmatpush.msra.mxu0 0.0
    %152 = vmatpush.msra.mxu0 0.0
    %153 = vmatpush.msra.mxu0 0.0
    %154 = vmatpush.msra.mxu0 %v98
    %155 = vmatpush.msra.mxu0 %v97
    %156 = vmatpush.msra.mxu0 %v96
    %157 = vmatpush.msra.mxu0 %v95
    %158 = vmatmul.f32.gmra.mxu0 %v140
    %v159 = vpop.f32.mrf.mxu0
    %v160 = vadd.f32 0.0, %v159
    %161 = vdwg.mxu0
    %vm162 = vcmask 523264
    %v163 = vsel %vm162, %v137, 0.0
    %v164 = vrot.slane %v163, 4
    %v165 = vadd.f32 %v163, %v164
    %v166 = vrot.slane %v165, 2
    %v167 = vadd.f32 %v165, %v166
    %v168 = vrot.slane %v167, 1
    %v169 = vadd.f32 %v167, %v168
    %v170 = vsel %vm162, %v160, 0.0
    %v171 = vrot.slane %v170, 4
    %v172 = vadd.f32 %v170, %v171
    %v173 = vrot.slane %v172, 2
    %v174 = vadd.f32 %v172, %v173
    %v175 = vrot.slane %v174, 1
    %v176 = vadd.f32 %v174, %v175
    %v177 = vadd.f32 %v169, %v176
    %v178 = vmul.f32 %v137, %v137
    %v179 = vsel %vm162, %v178, 0.0
    %v180 = vrot.slane %v179, 4
    %v181 = vadd.f32 %v179, %v180
    %v182 = vrot.slane %v181, 2
    %v183 = vadd.f32 %v181, %v182
    %v184 = vrot.slane %v183, 1
    %v185 = vadd.f32 %v183, %v184
    %v186 = vmul.f32 %v160, %v160
    %v187 = vsel %vm162, %v186, 0.0
    %v188 = vrot.slane %v187, 4
    %v189 = vadd.f32 %v187, %v188
    %v190 = vrot.slane %v189, 2
    %v191 = vadd.f32 %v189, %v190
    %v192 = vrot.slane %v191, 1
    %v193 = vadd.f32 %v191, %v192
    %v194 = vadd.f32 %v185, %v193
    %v195 = vmul.f32 %v177, 0.0625
    %v196 = vmul.f32 %v194, 0.0625
    %v197 = vmul.f32 %v195, %v195
    %v198 = vsub.f32 %v196, %v197
    %v199 = vadd.f32 %v198, 1e-05
    %v200 = vrsqrt.pop %v199
    %v201 = vmul.f32 %v200, %v199
    %v202 = vmul.f32 %v201, %v200
    %v203 = vmul.f32 0.5, %v202
    %v204 = vsub.f32 1.5, %v203
    %v205 = vmul.f32 %v200, %v204
    %vm206 = vweird.f32 %v199
    %vm207 = vweird.f32 %v200
    %vm208 = vmor %vm206, %vm207
    %v209 = vsel %vm208, %v200, %v205
    %v210 = vmul.f32 %v107, %v209
    %v211 = vmul.f32 %v195, %v210
    %v212 = vsub.f32 %v108, %v211
    %v213 = vperm.slane %v210, 0
    %v214 = vmul.f32 %v137, %v213
    %v215 = vperm.slane %v212, 0
    %v216 = vadd.f32 %v214, %v215
    %v217 = vmax.f32 %v216, 0.0
    %v218 = vmul.f32 %v160, %v213
    %v219 = vadd.f32 %v218, %v215
    %v220 = vmax.f32 %v219, 0.0
    %v222 = vsel %vm162, %v217, 0
    %224 = vmatpush.msra.mxu0 0.0
    %225 = vmatpush.msra.mxu0 0.0
    %226 = vmatpush.msra.mxu0 0.0
    %227 = vmatpush.msra.mxu0 0.0
    %228 = vmatpush.msra.mxu0 0.0
    %229 = vmatpush.msra.mxu0 0.0
    %230 = vmatpush.msra.mxu0 0.0
    %231 = vmatpush.msra.mxu0 0.0
    %232 = vmatpush.msra.mxu0 %v106
    %233 = vmatpush.msra.mxu0 %v105
    %234 = vmatpush.msra.mxu0 %v104
    %235 = vmatpush.msra.mxu0 %v103
    %236 = vmatpush.msra.mxu0 %v102
    %237 = vmatpush.msra.mxu0 %v101
    %238 = vmatpush.msra.mxu0 %v100
    %239 = vmatpush.msra.mxu0 %v99
    %240 = vmatmul.f32.gmra.mxu0 %v222
    %v241 = vpop.f32.mrf.mxu0
    %v242 = vadd.f32 0.0, %v241
    %243 = vdwg.mxu0
    %v245 = vsel %vm162, %v220, 0
    %247 = vmatpush.msra.mxu0 0.0
    %248 = vmatpush.msra.mxu0 0.0
    %249 = vmatpush.msra.mxu0 0.0
    %250 = vmatpush.msra.mxu0 0.0
    %251 = vmatpush.msra.mxu0 0.0
    %252 = vmatpush.msra.mxu0 0.0
    %253 = vmatpush.msra.mxu0 0.0
    %254 = vmatpush.msra.mxu0 0.0
    %255 = vmatpush.msra.mxu0 %v106
    %256 = vmatpush.msra.mxu0 %v105
    %257 = vmatpush.msra.mxu0 %v104
    %258 = vmatpush.msra.mxu0 %v103
    %259 = vmatpush.msra.mxu0 %v102
    %260 = vmatpush.msra.mxu0 %v101
    %261 = vmatpush.msra.mxu0 %v100
    %262 = vmatpush.msra.mxu0 %v99
    %263 = vmatmul.f32.gmra.mxu0 %v245
    %v264 = vpop.f32.mrf.mxu0
    %v265 = vadd.f32 0.0, %v264
    %266 = vdwg.mxu0
    %v267 = vsel %vm162, %v242, 0.0
    %v268 = vrot.slane %v267, 4
    %v269 = vadd.f32 %v267, %v268
    %v270 = vrot.slane %v269, 2
    %v271 = vadd.f32 %v269, %v270
    %v272 = vrot.slane %v271, 1
    %v273 = vadd.f32 %v271, %v272
    %v274 = vsel %vm162, %v265, 0.0
    %v275 = vrot.slane %v274, 4
    %v276 = vadd.f32 %v274, %v275
    %v277 = vrot.slane %v276, 2
    %v278 = vadd.f32 %v276, %v277
    %v279 = vrot.slane %v278, 1
    %v280 = vadd.f32 %v278, %v279
    %v281 = vadd.f32 %v273, %v280
    %v282 = vmul.f32 %v242, %v242
    %v283 = vsel %vm162, %v282, 0.0
    %v284 = vrot.slane %v283, 4
    %v285 = vadd.f32 %v283, %v284
    %v286 = vrot.slane %v285, 2
    %v287 = vadd.f32 %v285, %v286
    %v288 = vrot.slane %v287, 1
    %v289 = vadd.f32 %v287, %v288
    %v290 = vmul.f32 %v265, %v265
    %v291 = vsel %vm162, %v290, 0.0
    %v292 = vrot.slane %v291, 4
    %v293 = vadd.f32 %v291, %v292
    %v294 = vrot.slane %v293, 2
    %v295 = vadd.f32 %v293, %v294
    %v296 = vrot.slane %v295, 1
    %v297 = vadd.f32 %v295, %v296
    %v298 = vadd.f32 %v289, %v297
    %v299 = vmul.f32 %v281, 0.0625
    %v300 = vmul.f32 %v298, 0.0625
    %v301 = vmul.f32 %v299, %v299
    %v302 = vsub.f32 %v300, %v301
    %v303 = vadd.f32 %v302, 1e-05
    %v304 = vrsqrt.pop %v303
    %v305 = vmul.f32 %v304, %v303
    %v306 = vmul.f32 %v305, %v304
    %v307 = vmul.f32 0.5, %v306
    %v308 = vsub.f32 1.5, %v307
    %v309 = vmul.f32 %v304, %v308
    %vm310 = vweird.f32 %v303
    %vm311 = vweird.f32 %v304
    %vm312 = vmor %vm310, %vm311
    %v313 = vsel %vm312, %v304, %v309
    %v314 = vmul.f32 %v109, %v313
    %v315 = vmul.f32 %v299, %v314
    %v316 = vsub.f32 %v110, %v315
    %v317 = vperm.slane %v314, 0
    %v318 = vmul.f32 %v242, %v317
    %v319 = vperm.slane %v316, 0
    %v320 = vadd.f32 %v318, %v319
    %v321 = vmax.f32 %v320, 0.0
    %v322 = vmul.f32 %v265, %v317
    %v323 = vadd.f32 %v322, %v319
    %v324 = vmax.f32 %v323, 0.0
    %v325 = vmax.f32 %v321, %v324
    %v326 = vsel %vm162, %v325, 0.0
    %v327 = vrot.slane %v326, 4
    %v328 = vadd.f32 %v326, %v327
    %v329 = vrot.slane %v328, 2
    %v330 = vadd.f32 %v328, %v329
    %v331 = vrot.slane %v330, 1
    %v332 = vadd.f32 %v330, %v331
    %v333 = vmul.f32 %v325, %v325
    %v334 = vsel %vm162, %v333, 0.0
    %v335 = vrot.slane %v334, 4
    %v336 = vadd.f32 %v334, %v335
    %v337 = vrot.slane %v336, 2
    %v338 = vadd.f32 %v336, %v337
    %v339 = vrot.slane %v338, 1
    %v340 = vadd.f32 %v338, %v339
    %v341 = vmul.f32 %v332, 0.125
    %v342 = vmul.f32 %v340, 0.125
    %v343 = vmul.f32 %v341, %v341
    %v344 = vsub.f32 %v342, %v343
    %v345 = vadd.f32 %v344, 1e-05
    %v346 = vrsqrt.pop %v345
    %v347 = vmul.f32 %v346, %v345
    %v348 = vmul.f32 %v347, %v346
    %v349 = vmul.f32 0.5, %v348
    %v350 = vsub.f32 1.5, %v349
    %v351 = vmul.f32 %v346, %v350
    %vm352 = vweird.f32 %v345
    %vm353 = vweird.f32 %v346
    %vm354 = vmor %vm352, %vm353
    %v355 = vsel %vm354, %v346, %v351
    %v356 = vmul.f32 %v111, %v355
    %v357 = vperm.slane %v356, 0
    %v358 = vmul.f32 %v325, %v357
    %v359 = vmul.f32 %v341, %v356
    %v360 = vsub.f32 %v112, %v359
    %v361 = vperm.slane %v360, 0
    %v362 = vadd.f32 %v358, %v361
    %v363 = vmin.f32 %v93, %v94
    %v364 = vmax.f32 %v93, %v94
    %366 = vrot.lane.b32.xlu0 %v364, 32
    %v367 = vpop.permute.xlu0 %366
    %v369 = vsel %vm115, %v363, %v367
    %v370 = vsel %vm162, %v369, 0.0
    %v371 = vrot.slane %v370, 4
    %v372 = vadd.f32 %v370, %v371
    %v373 = vrot.slane %v372, 2
    %v374 = vadd.f32 %v372, %v373
    %v375 = vrot.slane %v374, 1
    %v376 = vadd.f32 %v374, %v375
    %v377 = vmul.f32 %v369, %v369
    %v378 = vsel %vm162, %v377, 0.0
    %v379 = vrot.slane %v378, 4
    %v380 = vadd.f32 %v378, %v379
    %v381 = vrot.slane %v380, 2
    %v382 = vadd.f32 %v380, %v381
    %v383 = vrot.slane %v382, 1
    %v384 = vadd.f32 %v382, %v383
    %v385 = vmul.f32 %v376, 0.125
    %v386 = vmul.f32 %v384, 0.125
    %v387 = vmul.f32 %v385, %v385
    %v388 = vsub.f32 %v386, %v387
    %v389 = vadd.f32 %v388, 1e-05
    %v390 = vrsqrt.pop %v389
    %v391 = vmul.f32 %v390, %v389
    %v392 = vmul.f32 %v391, %v390
    %v393 = vmul.f32 0.5, %v392
    %v394 = vsub.f32 1.5, %v393
    %v395 = vmul.f32 %v390, %v394
    %vm396 = vweird.f32 %v389
    %vm397 = vweird.f32 %v390
    %vm398 = vmor %vm396, %vm397
    %v399 = vsel %vm398, %v390, %v395
    %v400 = vmul.f32 %v113, %v399
    %v401 = vperm.slane %v400, 0
    %v402 = vmul.f32 %v369, %v401
    %v403 = vmul.f32 %v385, %v400
    %v404 = vsub.f32 %v114, %v403
    %v405 = vperm.slane %v404, 0
    %v406 = vadd.f32 %v402, %v405
    %408 = vrot.lane.b32.xlu0 %v406, 64
    %v409 = vpop.permute.xlu0 %408
    %v411 = vsel %vm162, %v362, %v409
    %412 = vst [vmem:[#allocation11] sm:$0xff] %v411
    // Predicated region
    $region42: #{tpu_custom_call.1} parent=1 // pred_check
      _
    $region43: #{tpu_custom_call.1} parent=1 // pred_check_branch
      %414 = sbr.rel (0) target = $region45
    $region44: #{tpu_custom_call.1} parent=1 // pred_region
      %416 = vsyncadd [#allocation4], 0
      %s418 = sshll.u32 [#allocation11], 4
      %s419 = int_to_ptr.vmem [resolvable:$true] %s418
      %s420 = sshll.u32 %s5, 4
      %s421 = int_to_ptr.hbm [resolvable:$true] %s420
      %423 = dma.vmem_to_hbm [thread:$0]  %s419, 128, %s421, [#allocation4]
    $region45: #{tpu_custom_call.1} parent=1 // pred_fallthru
      _
    // Predicated region
    $region46: #{tpu_custom_call.1} parent=1 // pred_check
      _
    $region47: #{tpu_custom_call.1} parent=1 // pred_check_branch
      %425 = sbr.rel (0) target = $region49
    $region48: #{tpu_custom_call.1} parent=1 // pred_region
      %427 = dma.done [#allocation4], 128
    $region49: #{tpu_custom_call.1} parent=1 // pred_fallthru
      _
    %428 = vsyncpa [#allocation3], 1
    %429 = vsyncpa [#allocation6], 1
    %430 = vsyncpa [#allocation9], 1
    %431 = vsyncpa [#allocation4], 1

</llo_original>
